<compile_context>
chip_gen: v7x
topology: tpu7x:2x2x1
jax: 0.10.0
libtpu: 0.0.40
codegen_flags: <defaults>
</compile_context>

<pallas_src>
import functools

import jax
import jax.numpy as jnp
from jax import lax
from jax.experimental import pallas as pl
from jax.experimental.pallas import tpu as pltpu


# --------------------------------------------------------------------------- #
# Prep: XW1 = X @ W1 (tiny, un-gridded, whole arrays in VMEM).                #
# --------------------------------------------------------------------------- #
def _gcae_xw1_kernel(x_ref, w1_ref, o_ref):
    o_ref[...] = jnp.dot(x_ref[...], w1_ref[...],
                         preferred_element_type=jnp.float32).astype(o_ref.dtype)


# --------------------------------------------------------------------------- #
# GCN layer 1 (row-tiled): hw2_tile = relu(adj_tile @ XW1) @ W2               #
# --------------------------------------------------------------------------- #
def _gcn_layer1_kernel(adj_ref, xw1_ref, w2_ref, hw2_ref):
    h = jnp.dot(adj_ref[...], xw1_ref[...], preferred_element_type=jnp.float32)
    h = jnp.maximum(h, 0.0)
    hw2_ref[...] = jnp.dot(h.astype(w2_ref.dtype), w2_ref[...],
                           preferred_element_type=jnp.float32).astype(hw2_ref.dtype)


# --------------------------------------------------------------------------- #
# GCN layer 2 (row-tiled): z_tile = adj_tile @ HW2                            #
# --------------------------------------------------------------------------- #
def _gcn_layer2_kernel(adj_ref, hw2_ref, z_ref):
    z_ref[...] = jnp.dot(adj_ref[...], hw2_ref[...],
                         preferred_element_type=jnp.float32)


def _gcn_layer2_cast_kernel(adj_ref, hw2_ref, z_ref, zc_ref):
    # Also emit the compute-dtype copy of Z (decoder input) directly — avoids
    # the wrapper-side cast (extra XLA op + HBM round trip).
    z = jnp.dot(adj_ref[...], hw2_ref[...], preferred_element_type=jnp.float32)
    z_ref[...] = z
    zc_ref[...] = z.astype(zc_ref.dtype)


# --------------------------------------------------------------------------- #
# Decoder + student-t: row-tiled over nodes ("parallel" grid axis).           #
# --------------------------------------------------------------------------- #
def _gcae_decoder_kernel(z_res_ref, mu_ref, a_pred_ref, q_ref, *, v, n_clusters):
    f32 = jnp.float32
    tm = a_pred_ref.shape[0]                                  # static row tile
    start = pl.multiple_of(pl.program_id(0) * tm, tm)
    z_t = z_res_ref[pl.ds(start, tm), :]                      # [tm, E] sliced from resident
    z_all = z_res_ref[...]                                    # [Np, E] resident

    # logits = z_tile @ Z^T — contract the LAST axes of both operands (the
    # standard TPU attention pattern; no transpose is materialized).
    dn = (((1,), (1,)), ((), ()))
    logits = lax.dot_general(z_t, z_all, dn, preferred_element_type=f32)  # [tm, Np]
    # (If the decoder ever runs compute-bound, sigmoid could be reduced to a
    #  single EUP op per element; it is HBM-writeback bound here.)
    a_pred_ref[...] = jax.nn.sigmoid(logits).astype(a_pred_ref.dtype)

    # Student-t assignment, all in f32.  dist^2 computed directly from the
    # differences (K*E is tiny) — no ||z||^2 + ||mu||^2 - 2 z.mu cancellation.
    z_f = z_t.astype(f32)                                     # [tm, E]
    mu_f = mu_ref[...].astype(f32)                            # [Kq, E] lane-padded clusters
    diff = z_f[:, None, :] - mu_f[None, :, :]                 # [tm, Kq, E]
    dist2 = jnp.sum(diff * diff, axis=2)                      # [tm, Kq]
    q = 1.0 / (1.0 + dist2 / v)
    exponent = (v + 1.0) / 2.0
    if exponent != 1.0:                                       # static; skipped for default v=1
        q = q ** exponent
    col = lax.broadcasted_iota(jnp.int32, q.shape, 1)
    q = jnp.where(col < n_clusters, q, 0.0)                   # zero the padded clusters
    # Exact row normalization: rows sum to 1 (no approx-reciprocal bias).
    q_ref[...] = q / jnp.sum(q, axis=1, keepdims=True)


# --------------------------------------------------------------------------- #
# Wrapper                                                                     #
# --------------------------------------------------------------------------- #
def _vmem_limit_bytes(working_set_bytes):
    # 2x working set (pipeline double-buffers + temporaries) + 4 MiB headroom,
    # floored at the 32 MiB scoped default, capped below physical VMEM.
    return int(min(max(2 * working_set_bytes + (4 << 20), 32 << 20), 100 << 20))


def gcae_forward(x, adj, w1, w2, cluster_centers, v=1.0,
                 compute_dtype=jnp.bfloat16, a_pred_dtype=jnp.bfloat16,
                 row_tile=256):
    """GCAE forward pass. Returns (A_pred, q, embedding).

    compute_dtype: MXU-input dtype for adj / activations (f32 accumulation).
      bfloat16 (default) halves the dominant N^2 adj HBM reads.
    a_pred_dtype: storage dtype of A_pred (cast after the f32 sigmoid); the
      decoder is writeback-bound, so bfloat16 (default) is ~2x on that phase.
    row_tile: node-row tile, rounded up to a multiple of 128. Sweep 256/512
      for large N.
    """
    f32 = jnp.float32
    n, d_in = x.shape
    k, e = cluster_centers.shape
    hid = w1.shape[1]
    cd = jnp.dtype(compute_dtype)
    cd_b = cd.itemsize
    ap_b = jnp.dtype(a_pred_dtype).itemsize

    # Node axis padded to a multiple of the row tile (itself a multiple of 128)
    # -> lane-dense A_pred slabs, no tm=n single-block fallback.
    row_tile = max(128, ((int(row_tile) + 127) // 128) * 128)
    np_ = ((n + row_tile - 1) // row_tile) * row_tile
    pad = np_ - n
    if pad:
        x = jnp.pad(x, ((0, pad), (0, 0)))
        adj = jnp.pad(adj, ((0, pad), (0, pad)))
    grid = (np_ // row_tile,)

    # Cast MXU inputs once (bf16 default: halves adj DMA, doubles MXU rate).
    # TODO(synk): int8 (v5e/v6e) / fp8 (v7x) quantized adj with per-row scales
    # would cut the dominant encoder HBM read a further ~2x.
    xc = x.astype(cd)
    adjc = adj.astype(cd)
    w1c = w1.astype(cd)
    w2c = w2.astype(cd)

    # ---- prep: XW1 = X @ W1 (tiny, un-gridded) -------------------------------
    xw1 = pl.pallas_call(
        _gcae_xw1_kernel,
        out_shape=jax.ShapeDtypeStruct((np_, hid), cd),
        in_specs=[pl.BlockSpec(memory_space=pltpu.MemorySpace.VMEM)] * 2,
        out_specs=pl.BlockSpec(memory_space=pltpu.MemorySpace.VMEM),
        compiler_params=pltpu.CompilerParams(
            vmem_limit_bytes=_vmem_limit_bytes(
                (np_ * d_in + d_in * hid + np_ * hid) * cd_b + np_ * hid * 4)),
    )(xc, w1c)

    # ---- GCN layer 1 (row-tiled over adj rows): HW2 = relu(adj @ XW1) @ W2 ---
    l1_ws = ((row_tile * np_ + np_ * hid + hid * e + row_tile * e) * cd_b
             + row_tile * hid * 4)
    hw2 = pl.pallas_call(
        _gcn_layer1_kernel,
        out_shape=jax.ShapeDtypeStruct((np_, e), cd),
        grid=grid,
        in_specs=[
            pl.BlockSpec((row_tile, np_), lambda i: (i, 0)),   # adj row tile
            pl.BlockSpec((np_, hid), lambda i: (0, 0)),        # X W1 resident
            pl.BlockSpec((hid, e), lambda i: (0, 0)),          # W2 resident
        ],
        out_specs=pl.BlockSpec((row_tile, e), lambda i: (i, 0)),
        compiler_params=pltpu.CompilerParams(
            dimension_semantics=("parallel",),
            vmem_limit_bytes=_vmem_limit_bytes(l1_ws)),
    )(adjc, xw1, w2c)

    # ---- GCN layer 2 (row-tiled): Z = adj @ HW2 -------------------------------
    l2_ws = (row_tile * np_ + np_ * e) * cd_b + row_tile * e * (4 + cd_b)
    cp_l2 = pltpu.CompilerParams(dimension_semantics=("parallel",),
                                 vmem_limit_bytes=_vmem_limit_bytes(l2_ws))
    l2_in_specs = [
        pl.BlockSpec((row_tile, np_), lambda i: (i, 0)),       # adj row tile
        pl.BlockSpec((np_, e), lambda i: (0, 0)),              # H W2 resident
    ]
    z_spec = pl.BlockSpec((row_tile, e), lambda i: (i, 0))
    if cd != jnp.dtype(f32):
        z_pad, z_res = pl.pallas_call(
            _gcn_layer2_cast_kernel,
            out_shape=(jax.ShapeDtypeStruct((np_, e), f32),
                       jax.ShapeDtypeStruct((np_, e), cd)),
            grid=grid, in_specs=l2_in_specs, out_specs=(z_spec, z_spec),
            compiler_params=cp_l2,
        )(adjc, hw2)
    else:
        z_pad = pl.pallas_call(
            _gcn_layer2_kernel,
            out_shape=jax.ShapeDtypeStruct((np_, e), f32),
            grid=grid, in_specs=l2_in_specs, out_specs=z_spec,
            compiler_params=cp_l2,
        )(adjc, hw2)
        z_res = z_pad

    # ---- decoder + student-t (row-tiled, "parallel") --------------------------
    # Cluster centers lane-padded to a multiple of 128 so the q store is a full
    # unmasked vst; padded clusters are masked out inside the kernel.
    kq = max(128, ((k + 127) // 128) * 128)
    mu_pad = jnp.pad(cluster_centers, ((0, kq - k), (0, 0))).astype(cd)
    dec_ws = ((np_ + kq) * e * cd_b + row_tile * np_ * (ap_b + 4)
              + row_tile * kq * (4 + 4 * e))
    # TODO(synk): very large N on v7x (64 MiB VMEM) -> 2D (row x column-block)
    # decoder grid and/or pl.Buffered(1) residents to bound the A_pred buffers.
    a_pred_pad, q_pad = pl.pallas_call(
        functools.partial(_gcae_decoder_kernel, v=float(v), n_clusters=k),
        out_shape=(jax.ShapeDtypeStruct((np_, np_), a_pred_dtype),
                   jax.ShapeDtypeStruct((np_, kq), f32)),
        grid=grid,
        in_specs=[
            pl.BlockSpec((np_, e), lambda i: (0, 0)),          # Z resident (compute dtype)
            pl.BlockSpec((kq, e), lambda i: (0, 0)),           # clusters resident
        ],
        out_specs=(
            pl.BlockSpec((row_tile, np_), lambda i: (i, 0)),   # lane-dense A_pred slab
            pl.BlockSpec((row_tile, kq), lambda i: (i, 0)),    # lane-dense q slab
        ),
        compiler_params=pltpu.CompilerParams(
            dimension_semantics=("parallel",),
            vmem_limit_bytes=_vmem_limit_bytes(dec_ws)),
    )(z_res, mu_pad)

    # Un-pad back to the caller's shapes.
    return a_pred_pad[:n, :n], q_pad[:n, :k], z_pad[:n]


# --------------------------------------------------------------------------- #
# Demo / self-test                                                            #
# --------------------------------------------------------------------------- #
def _xavier_normal(key, shape):
    fan_in, fan_out = shape
    std = (2.0 / (fan_in + fan_out)) ** 0.5
    return std * jax.random.normal(key, shape, dtype=jnp.float32)


def _make_graph(key, n, input_dim):
    k_x, k_a = jax.random.split(key)
    x = jax.random.normal(k_x, (n, input_dim), dtype=jnp.float32)
    a_raw = (jax.random.uniform(k_a, (n, n)) > 0.7).astype(jnp.float32)
    a_sym = jnp.maximum(a_raw, a_raw.T) + jnp.eye(n, dtype=jnp.float32)
    adj = a_sym / jnp.sum(a_sym, axis=1, keepdims=True)
    return x, adj


def _reference(x, adj, w1, w2, mu, v):
    hp = jax.lax.Precision.HIGHEST
    h = jnp.maximum(jnp.dot(adj, jnp.dot(x, w1, precision=hp), precision=hp), 0.0)
    z = jnp.dot(adj, jnp.dot(h, w2, precision=hp), precision=hp)
    a = jax.nn.sigmoid(jnp.dot(z, z.T, precision=hp))
    d2 = jnp.sum((z[:, None, :] - mu[None, :, :]) ** 2, axis=2)
    q = 1.0 / (1.0 + d2 / v)
    q = q ** ((v + 1.0) / 2.0)
    q = q / jnp.sum(q, axis=1, keepdims=True)
    return a, q, z


if __name__ == "__main__":
    input_dim, hidden_size, embedding_dim, output_dim, v = 32, 32, 16, 4, 1.0

    key = jax.random.PRNGKey(0)
    k_g, k_w1, k_w2, k_mu, k_g2 = jax.random.split(key, 5)
    w1 = _xavier_normal(k_w1, (input_dim, hidden_size))
    w2 = _xavier_normal(k_w2, (hidden_size, embedding_dim))
    mu = _xavier_normal(k_mu, (output_dim, embedding_dim))

    # ---- config A: N=256, all-f32, row_tile=128 (2-step "parallel" grid) -----
    x, adj = _make_graph(k_g, 256, input_dim)
    a_ref, q_ref, z_ref = _reference(x, adj, w1, w2, mu, v)
    a_p, q_p, z_p = gcae_forward(x, adj, w1, w2, mu, v=v,
                                 compute_dtype=jnp.float32,
                                 a_pred_dtype=jnp.float32, row_tile=128)
    jax.block_until_ready((a_p, q_p, z_p))
    assert jnp.allclose(z_p, z_ref, atol=1e-3), "f32 embedding mismatch"
    assert jnp.allclose(a_p, a_ref, atol=1e-3), "f32 A_pred mismatch"
    assert jnp.allclose(q_p, q_ref, atol=1e-3), "f32 q mismatch"
    assert jnp.allclose(jnp.sum(q_p, axis=1), 1.0, atol=1e-5), "q rows must sum to 1"

    # ---- config B: same graph, perf defaults (bf16 MXU inputs, bf16 A_pred) --
    a16, q16, z16 = gcae_forward(x, adj, w1, w2, mu, v=v)
    jax.block_until_ready((a16, q16, z16))
    assert jnp.allclose(z16, z_ref, atol=2e-2), "bf16 embedding mismatch"
    assert jnp.allclose(a16.astype(jnp.float32), a_ref, atol=2e-2), "bf16 A_pred mismatch"
    assert jnp.allclose(q16, q_ref, atol=2e-2), "bf16 q mismatch"

    # ---- config C: N not a multiple of the row tile -> node-axis padding -----
    x3, adj3 = _make_graph(k_g2, 200, input_dim)
    a_ref3, q_ref3, z_ref3 = _reference(x3, adj3, w1, w2, mu, v)
    a3, q3, z3 = gcae_forward(x3, adj3, w1, w2, mu, v=v,
                              compute_dtype=jnp.float32,
                              a_pred_dtype=jnp.float32)
    jax.block_until_ready((a3, q3, z3))
    assert a3.shape == (200, 200) and q3.shape == (200, output_dim)
    assert z3.shape == (200, embedding_dim)
    assert jnp.allclose(z3, z_ref3, atol=1e-3), "padded embedding mismatch"
    assert jnp.allclose(a3, a_ref3, atol=1e-3), "padded A_pred mismatch"
    assert jnp.allclose(q3, q_ref3, atol=1e-3), "padded q mismatch"

    print("KERNEL_OK")
</pallas_src>

<mosaic_0001>
module attributes {stable_mosaic.version = 11 : i64} {
  func.func @_gcae_xw1_kernel(%arg0: memref<256x32xf32, #tpu.memory_space<vmem>>, %arg1: memref<32x32xf32, #tpu.memory_space<vmem>>, %arg2: memref<256x32xf32, #tpu.memory_space<vmem>>) attributes {dimension_semantics = [], scalar_prefetch = 0 : i64, scratch_operands = 0 : i64, tpu.core_type = #tpu.core_type<tc>} {
    %c0 = arith.constant 0 : index
    %c0_0 = arith.constant 0 : index
    %0 = vector.load %arg0[%c0, %c0_0] : memref<256x32xf32, #tpu.memory_space<vmem>>, vector<256x32xf32>
    %c0_1 = arith.constant 0 : index
    %c0_2 = arith.constant 0 : index
    %1 = vector.load %arg1[%c0_1, %c0_2] : memref<32x32xf32, #tpu.memory_space<vmem>>, vector<32x32xf32>
    %cst = arith.constant dense<0.000000e+00> : vector<256x32xf32>
    %2 = tpu.matmul %0, %1, %cst {dimension_numbers = #tpu.dot_dimension_numbers<[1], [0], [0], [1], [0, 0, 1, 1], [], []>} : vector<256x32xf32>, vector<32x32xf32>, vector<256x32xf32> -> vector<256x32xf32>
    %c0_3 = arith.constant 0 : index
    %c0_4 = arith.constant 0 : index
    %3 = vector.load %arg2[%c0_3, %c0_4] : memref<256x32xf32, #tpu.memory_space<vmem>>, vector<256x32xf32>
    tpu.vector_store %arg2[%c0_3, %c0_4], %2 {strides = array<i32>} : memref<256x32xf32, #tpu.memory_space<vmem>>, vector<256x32xf32>,
    return
  }
}

</mosaic_0001>

<llo_original>
// kernel: tpu_custom_call.1
$region0: #{tpu_custom_call.1}
  #allocation0 [shape = 'u32[]', space=smem, size = 0x4, offset = 0x4, fixed_abs, tag = 'smem constant byte address 0x4 - core index']
  #allocation1 [shape = 'u32[144,128]{1,0:T(1,128)}', space=vmem, size = 0x12000, scoped, tag = 'internal scratch']
  %s0 = inlined_call_operand.vmem [shape: f32[256,32], index: 0, kind: input, shape index: {}]
  %s1 = inlined_call_operand.vmem [shape: f32[32,32], index: 1, kind: input, shape index: {}]
  %s2 = inlined_call_operand.vmem [shape: f32[256,32], index: 2, kind: output, shape index: {}]
  %s3 = sld [smem:[#allocation0]]
  $region18: #{tpu_custom_call.1} parent=0
    _
  %s5 = ssub.s32 1, %s3
  %s6 = scalar_select 0, %s5, %s3
  // Predicated region
  $region2: #{tpu_custom_call.1} parent=0 // pred_check
    _
  $region3: #{tpu_custom_call.1} parent=0 // pred_check_branch
    %8 = sbr.rel (0) target = $region5
  $region4: #{tpu_custom_call.1} parent=0 // pred_region
    _
  $region5: #{tpu_custom_call.1} parent=0 // pred_fallthru
    _
  // Predicated region
  $region6: #{tpu_custom_call.1} parent=0 // pred_check
    _
  $region7: #{tpu_custom_call.1} parent=0 // pred_check_branch
    %10 = sbr.rel (0) target = $region9
  $region8: #{tpu_custom_call.1} parent=0 // pred_region
    _
  $region9: #{tpu_custom_call.1} parent=0 // pred_fallthru
    _
  %v11 = vld [vmem:[%s0] sm:$0xff]
  %v12 = vld [vmem:[%s0 + $0x8] sm:$0xff]
  %v13 = vld [vmem:[%s0 + $0x10] sm:$0xff]
  %v14 = vld [vmem:[%s0 + $0x18] sm:$0xff]
  %v15 = vld [vmem:[%s0 + $0x20] sm:$0xff]
  %v16 = vld [vmem:[%s0 + $0x28] sm:$0xff]
  %v17 = vld [vmem:[%s0 + $0x30] sm:$0xff]
  %v18 = vld [vmem:[%s0 + $0x38] sm:$0xff]
  %v19 = vld [vmem:[%s0 + $0x40] sm:$0xff]
  %v20 = vld [vmem:[%s0 + $0x48] sm:$0xff]
  %v21 = vld [vmem:[%s0 + $0x50] sm:$0xff]
  %v22 = vld [vmem:[%s0 + $0x58] sm:$0xff]
  %v23 = vld [vmem:[%s0 + $0x60] sm:$0xff]
  %v24 = vld [vmem:[%s0 + $0x68] sm:$0xff]
  %v25 = vld [vmem:[%s0 + $0x70] sm:$0xff]
  %v26 = vld [vmem:[%s0 + $0x78] sm:$0xff]
  %v27 = vld [vmem:[%s0 + $0x80] sm:$0xff]
  %v28 = vld [vmem:[%s0 + $0x88] sm:$0xff]
  %v29 = vld [vmem:[%s0 + $0x90] sm:$0xff]
  %v30 = vld [vmem:[%s0 + $0x98] sm:$0xff]
  %v31 = vld [vmem:[%s0 + $0xa0] sm:$0xff]
  %v32 = vld [vmem:[%s0 + $0xa8] sm:$0xff]
  %v33 = vld [vmem:[%s0 + $0xb0] sm:$0xff]
  %v34 = vld [vmem:[%s0 + $0xb8] sm:$0xff]
  %v35 = vld [vmem:[%s0 + $0xc0] sm:$0xff]
  %v36 = vld [vmem:[%s0 + $0xc8] sm:$0xff]
  %v37 = vld [vmem:[%s0 + $0xd0] sm:$0xff]
  %v38 = vld [vmem:[%s0 + $0xd8] sm:$0xff]
  %v39 = vld [vmem:[%s0 + $0xe0] sm:$0xff]
  %v40 = vld [vmem:[%s0 + $0xe8] sm:$0xff]
  %v41 = vld [vmem:[%s0 + $0xf0] sm:$0xff]
  %v42 = vld [vmem:[%s0 + $0xf8] sm:$0xff]
  %v43 = vld [vmem:[%s1] sm:$0xff]
  %v44 = vld [vmem:[%s1 + $0x8] sm:$0xff]
  %v45 = vld [vmem:[%s1 + $0x10] sm:$0xff]
  %v46 = vld [vmem:[%s1 + $0x18] sm:$0xff]
  %vm47 = vcmask 261120
  %v49 = vsel %vm47, %v11, 0
  %v52 = vsel %vm47, %v12, 0
  %v55 = vsel %vm47, %v13, 0
  %v58 = vsel %vm47, %v14, 0
  %v61 = vsel %vm47, %v15, 0
  %v64 = vsel %vm47, %v16, 0
  %v67 = vsel %vm47, %v17, 0
  %v70 = vsel %vm47, %v18, 0
  %v73 = vsel %vm47, %v19, 0
  %v76 = vsel %vm47, %v20, 0
  %v79 = vsel %vm47, %v21, 0
  %v82 = vsel %vm47, %v22, 0
  %v85 = vsel %vm47, %v23, 0
  %v88 = vsel %vm47, %v24, 0
  %v91 = vsel %vm47, %v25, 0
  %v94 = vsel %vm47, %v26, 0
  %v97 = vsel %vm47, %v27, 0
  %v100 = vsel %vm47, %v28, 0
  %v103 = vsel %vm47, %v29, 0
  %v106 = vsel %vm47, %v30, 0
  %v109 = vsel %vm47, %v31, 0
  %v112 = vsel %vm47, %v32, 0
  %v115 = vsel %vm47, %v33, 0
  %v118 = vsel %vm47, %v34, 0
  %v121 = vsel %vm47, %v35, 0
  %v124 = vsel %vm47, %v36, 0
  %v127 = vsel %vm47, %v37, 0
  %v130 = vsel %vm47, %v38, 0
  %v133 = vsel %vm47, %v39, 0
  %v136 = vsel %vm47, %v40, 0
  %v139 = vsel %vm47, %v41, 0
  %v142 = vsel %vm47, %v42, 0
  %144 = vmatprep.subr.mxu0 0.0
  %145 = vmatpush1.msra.mxu0 %v43
  %146 = vmatprep.subr.mxu0 0.0
  %147 = vmatpush1.msra.mxu0 %v44
  %148 = vmatprep.subr.mxu0 0.0
  %149 = vmatpush1.msra.mxu0 %v45
  %150 = vmatprep.subr.mxu0 0.0
  %151 = vmatpush1.msra.mxu0 %v46
  %152 = vmatprep.subr.mxu0 0.0
  %153 = vmatpush1.msra.mxu0 0.0
  %154 = vmatprep.subr.mxu0 0.0
  %155 = vmatpush1.msra.mxu0 0.0
  %156 = vmatprep.subr.mxu0 0.0
  %157 = vmatpush1.msra.mxu0 0.0
  %158 = vmatprep.subr.mxu0 0.0
  %159 = vmatpush1.msra.mxu0 0.0
  %160 = vmatprep.subr.mxu0 0.0
  %161 = vmatpush1.msra.mxu0 0.0
  %162 = vmatprep.subr.mxu0 0.0
  %163 = vmatpush1.msra.mxu0 0.0
  %164 = vmatprep.subr.mxu0 0.0
  %165 = vmatpush1.msra.mxu0 0.0
  %166 = vmatprep.subr.mxu0 0.0
  %167 = vmatpush1.msra.mxu0 0.0
  %168 = vmatprep.subr.mxu0 0.0
  %169 = vmatpush1.msra.mxu0 0.0
  %170 = vmatprep.subr.mxu0 0.0
  %171 = vmatpush1.msra.mxu0 0.0
  %172 = vmatprep.subr.mxu0 0.0
  %173 = vmatpush1.msra.mxu0 0.0
  %174 = vmatprep.subr.mxu0 0.0
  %175 = vmatpush1.msra.mxu0 0.0
  %176 = vmatprep.subr.mxu0 0.0
  %177 = vmatpush1.msra.mxu0 0.0
  %178 = vmatprep.subr.mxu0 0.0
  %179 = vmatpush1.msra.mxu0 0.0
  %180 = vmatprep.subr.mxu0 0.0
  %181 = vmatpush1.msra.mxu0 0.0
  %182 = vmatprep.subr.mxu0 0.0
  %183 = vmatpush1.msra.mxu0 0.0
  %184 = vmatprep.subr.mxu0 0.0
  %185 = vmatpush1.msra.mxu0 0.0
  %186 = vmatprep.subr.mxu0 0.0
  %187 = vmatpush1.msra.mxu0 0.0
  %188 = vmatprep.subr.mxu0 0.0
  %189 = vmatpush1.msra.mxu0 0.0
  %190 = vmatprep.subr.mxu0 0.0
  %191 = vmatpush1.msra.mxu0 0.0
  %192 = vmatprep.subr.mxu0 0.0
  %193 = vmatpush1.msra.mxu0 0.0
  %194 = vmatprep.subr.mxu0 0.0
  %195 = vmatpush1.msra.mxu0 0.0
  %196 = vmatprep.subr.mxu0 0.0
  %197 = vmatpush1.msra.mxu0 0.0
  %198 = vmatprep.subr.mxu0 0.0
  %199 = vmatpush1.msra.mxu0 0.0
  %200 = vmatprep.subr.mxu0 0.0
  %201 = vmatpush1.msra.mxu0 0.0
  %202 = vmatprep.subr.mxu0 0.0
  %203 = vmatpush1.msra.mxu0 0.0
  %204 = vmatprep.subr.mxu0 0.0
  %205 = vmatpush1.msra.mxu0 0.0
  %206 = vmatprep.subr.mxu0 0.0
  %207 = vmatpush1.msra.mxu0 0.0
  %208 = vmatprep.mubr.f32.mxu0 0.0
  %209 = vmatmul.mubr.f32.gmra.mrb[0].mxu0 %v49
  %v210 = vpop.f32.mrb[0].mxu0
  %v211 = vadd.f32 0.0, %v210
  %v212 = vpop.f32.mrb[0].mxu0
  %213 = vmatprep.mubr.f32.mxu0 0.0
  %214 = vmatmul.mubr.f32.gmra.mrb[0].mxu0 %v52
  %v215 = vpop.f32.mrb[0].mxu0
  %v216 = vadd.f32 0.0, %v215
  %v217 = vpop.f32.mrb[0].mxu0
  %218 = vmatprep.mubr.f32.mxu0 0.0
  %219 = vmatmul.mubr.f32.gmra.mrb[0].mxu0 %v55
  %v220 = vpop.f32.mrb[0].mxu0
  %v221 = vadd.f32 0.0, %v220
  %v222 = vpop.f32.mrb[0].mxu0
  %223 = vmatprep.mubr.f32.mxu0 0.0
  %224 = vmatmul.mubr.f32.gmra.mrb[0].mxu0 %v58
  %v225 = vpop.f32.mrb[0].mxu0
  %v226 = vadd.f32 0.0, %v225
  %v227 = vpop.f32.mrb[0].mxu0
  %228 = vmatprep.mubr.f32.mxu0 0.0
  %229 = vmatmul.mubr.f32.gmra.mrb[0].mxu0 %v61
  %v230 = vpop.f32.mrb[0].mxu0
  %v231 = vadd.f32 0.0, %v230
  %v232 = vpop.f32.mrb[0].mxu0
  %233 = vmatprep.mubr.f32.mxu0 0.0
  %234 = vmatmul.mubr.f32.gmra.mrb[0].mxu0 %v64
  %v235 = vpop.f32.mrb[0].mxu0
  %v236 = vadd.f32 0.0, %v235
  %v237 = vpop.f32.mrb[0].mxu0
  %238 = vmatprep.mubr.f32.mxu0 0.0
  %239 = vmatmul.mubr.f32.gmra.mrb[0].mxu0 %v67
  %v240 = vpop.f32.mrb[0].mxu0
  %v241 = vadd.f32 0.0, %v240
  %v242 = vpop.f32.mrb[0].mxu0
  %243 = vmatprep.mubr.f32.mxu0 0.0
  %244 = vmatmul.mubr.f32.gmra.mrb[0].mxu0 %v70
  %v245 = vpop.f32.mrb[0].mxu0
  %v246 = vadd.f32 0.0, %v245
  %v247 = vpop.f32.mrb[0].mxu0
  %248 = vmatprep.mubr.f32.mxu0 0.0
  %249 = vmatmul.mubr.f32.gmra.mrb[0].mxu0 %v73
  %v250 = vpop.f32.mrb[0].mxu0
  %v251 = vadd.f32 0.0, %v250
  %v252 = vpop.f32.mrb[0].mxu0
  %253 = vmatprep.mubr.f32.mxu0 0.0
  %254 = vmatmul.mubr.f32.gmra.mrb[0].mxu0 %v76
  %v255 = vpop.f32.mrb[0].mxu0
  %v256 = vadd.f32 0.0, %v255
  %v257 = vpop.f32.mrb[0].mxu0
  %258 = vmatprep.mubr.f32.mxu0 0.0
  %259 = vmatmul.mubr.f32.gmra.mrb[0].mxu0 %v79
  %v260 = vpop.f32.mrb[0].mxu0
  %v261 = vadd.f32 0.0, %v260
  %v262 = vpop.f32.mrb[0].mxu0
  %263 = vmatprep.mubr.f32.mxu0 0.0
  %264 = vmatmul.mubr.f32.gmra.mrb[0].mxu0 %v82
  %v265 = vpop.f32.mrb[0].mxu0
  %v266 = vadd.f32 0.0, %v265
  %v267 = vpop.f32.mrb[0].mxu0
  %268 = vmatprep.mubr.f32.mxu0 0.0
  %269 = vmatmul.mubr.f32.gmra.mrb[0].mxu0 %v85
  %v270 = vpop.f32.mrb[0].mxu0
  %v271 = vadd.f32 0.0, %v270
  %v272 = vpop.f32.mrb[0].mxu0
  %273 = vmatprep.mubr.f32.mxu0 0.0
  %274 = vmatmul.mubr.f32.gmra.mrb[0].mxu0 %v88
  %v275 = vpop.f32.mrb[0].mxu0
  %v276 = vadd.f32 0.0, %v275
  %v277 = vpop.f32.mrb[0].mxu0
  %278 = vmatprep.mubr.f32.mxu0 0.0
  %279 = vmatmul.mubr.f32.gmra.mrb[0].mxu0 %v91
  %v280 = vpop.f32.mrb[0].mxu0
  %v281 = vadd.f32 0.0, %v280
  %v282 = vpop.f32.mrb[0].mxu0
  %283 = vmatprep.mubr.f32.mxu0 0.0
  %284 = vmatmul.mubr.f32.gmra.mrb[0].mxu0 %v94
  %v285 = vpop.f32.mrb[0].mxu0
  %v286 = vadd.f32 0.0, %v285
  %v287 = vpop.f32.mrb[0].mxu0
  %288 = vmatprep.mubr.f32.mxu0 0.0
  %289 = vmatmul.mubr.f32.gmra.mrb[0].mxu0 %v97
  %v290 = vpop.f32.mrb[0].mxu0
  %v291 = vadd.f32 0.0, %v290
  %v292 = vpop.f32.mrb[0].mxu0
  %293 = vmatprep.mubr.f32.mxu0 0.0
  %294 = vmatmul.mubr.f32.gmra.mrb[0].mxu0 %v100
  %v295 = vpop.f32.mrb[0].mxu0
  %v296 = vadd.f32 0.0, %v295
  %v297 = vpop.f32.mrb[0].mxu0
  %298 = vmatprep.mubr.f32.mxu0 0.0
  %299 = vmatmul.mubr.f32.gmra.mrb[0].mxu0 %v103
  %v300 = vpop.f32.mrb[0].mxu0
  %v301 = vadd.f32 0.0, %v300
  %v302 = vpop.f32.mrb[0].mxu0
  %303 = vmatprep.mubr.f32.mxu0 0.0
  %304 = vmatmul.mubr.f32.gmra.mrb[0].mxu0 %v106
  %v305 = vpop.f32.mrb[0].mxu0
  %v306 = vadd.f32 0.0, %v305
  %v307 = vpop.f32.mrb[0].mxu0
  %308 = vmatprep.mubr.f32.mxu0 0.0
  %309 = vmatmul.mubr.f32.gmra.mrb[0].mxu0 %v109
  %v310 = vpop.f32.mrb[0].mxu0
  %v311 = vadd.f32 0.0, %v310
  %v312 = vpop.f32.mrb[0].mxu0
  %313 = vmatprep.mubr.f32.mxu0 0.0
  %314 = vmatmul.mubr.f32.gmra.mrb[0].mxu0 %v112
  %v315 = vpop.f32.mrb[0].mxu0
  %v316 = vadd.f32 0.0, %v315
  %v317 = vpop.f32.mrb[0].mxu0
  %318 = vmatprep.mubr.f32.mxu0 0.0
  %319 = vmatmul.mubr.f32.gmra.mrb[0].mxu0 %v115
  %v320 = vpop.f32.mrb[0].mxu0
  %v321 = vadd.f32 0.0, %v320
  %v322 = vpop.f32.mrb[0].mxu0
  %323 = vmatprep.mubr.f32.mxu0 0.0
  %324 = vmatmul.mubr.f32.gmra.mrb[0].mxu0 %v118
  %v325 = vpop.f32.mrb[0].mxu0
  %v326 = vadd.f32 0.0, %v325
  %v327 = vpop.f32.mrb[0].mxu0
  %328 = vmatprep.mubr.f32.mxu0 0.0
  %329 = vmatmul.mubr.f32.gmra.mrb[0].mxu0 %v121
  %v330 = vpop.f32.mrb[0].mxu0
  %v331 = vadd.f32 0.0, %v330
  %v332 = vpop.f32.mrb[0].mxu0
  %333 = vmatprep.mubr.f32.mxu0 0.0
  %334 = vmatmul.mubr.f32.gmra.mrb[0].mxu0 %v124
  %v335 = vpop.f32.mrb[0].mxu0
  %v336 = vadd.f32 0.0, %v335
  %v337 = vpop.f32.mrb[0].mxu0
  %338 = vmatprep.mubr.f32.mxu0 0.0
  %339 = vmatmul.mubr.f32.gmra.mrb[0].mxu0 %v127
  %v340 = vpop.f32.mrb[0].mxu0
  %v341 = vadd.f32 0.0, %v340
  %v342 = vpop.f32.mrb[0].mxu0
  %343 = vmatprep.mubr.f32.mxu0 0.0
  %344 = vmatmul.mubr.f32.gmra.mrb[0].mxu0 %v130
  %v345 = vpop.f32.mrb[0].mxu0
  %v346 = vadd.f32 0.0, %v345
  %v347 = vpop.f32.mrb[0].mxu0
  %348 = vmatprep.mubr.f32.mxu0 0.0
  %349 = vmatmul.mubr.f32.gmra.mrb[0].mxu0 %v133
  %v350 = vpop.f32.mrb[0].mxu0
  %v351 = vadd.f32 0.0, %v350
  %v352 = vpop.f32.mrb[0].mxu0
  %353 = vmatprep.mubr.f32.mxu0 0.0
  %354 = vmatmul.mubr.f32.gmra.mrb[0].mxu0 %v136
  %v355 = vpop.f32.mrb[0].mxu0
  %v356 = vadd.f32 0.0, %v355
  %v357 = vpop.f32.mrb[0].mxu0
  %358 = vmatprep.mubr.f32.mxu0 0.0
  %359 = vmatmul.mubr.f32.gmra.mrb[0].mxu0 %v139
  %v360 = vpop.f32.mrb[0].mxu0
  %v361 = vadd.f32 0.0, %v360
  %v362 = vpop.f32.mrb[0].mxu0
  %363 = vmatprep.mubr.f32.mxu0 0.0
  %364 = vmatmul.mubr.f32.gmra.mrb[0].mxu0 %v142
  %v365 = vpop.f32.mrb[0].mxu0
  %v366 = vadd.f32 0.0, %v365
  %v367 = vpop.f32.mrb[0].mxu0
  %368 = vdwg.mxu0
  %369 = vst.msk [vmem:[%s2] sm:$0xff] %vm47, %v211
  %370 = vst.msk [vmem:[%s2 + $0x8] sm:$0xff] %vm47, %v216
  %371 = vst.msk [vmem:[%s2 + $0x10] sm:$0xff] %vm47, %v221
  %372 = vst.msk [vmem:[%s2 + $0x18] sm:$0xff] %vm47, %v226
  %373 = vst.msk [vmem:[%s2 + $0x20] sm:$0xff] %vm47, %v231
  %374 = vst.msk [vmem:[%s2 + $0x28] sm:$0xff] %vm47, %v236
  %375 = vst.msk [vmem:[%s2 + $0x30] sm:$0xff] %vm47, %v241
  %376 = vst.msk [vmem:[%s2 + $0x38] sm:$0xff] %vm47, %v246
  %377 = vst.msk [vmem:[%s2 + $0x40] sm:$0xff] %vm47, %v251
  %378 = vst.msk [vmem:[%s2 + $0x48] sm:$0xff] %vm47, %v256
  %379 = vst.msk [vmem:[%s2 + $0x50] sm:$0xff] %vm47, %v261
  %380 = vst.msk [vmem:[%s2 + $0x58] sm:$0xff] %vm47, %v266
  %381 = vst.msk [vmem:[%s2 + $0x60] sm:$0xff] %vm47, %v271
  %382 = vst.msk [vmem:[%s2 + $0x68] sm:$0xff] %vm47, %v276
  %383 = vst.msk [vmem:[%s2 + $0x70] sm:$0xff] %vm47, %v281
  %384 = vst.msk [vmem:[%s2 + $0x78] sm:$0xff] %vm47, %v286
  %385 = vst.msk [vmem:[%s2 + $0x80] sm:$0xff] %vm47, %v291
  %386 = vst.msk [vmem:[%s2 + $0x88] sm:$0xff] %vm47, %v296
  %387 = vst.msk [vmem:[%s2 + $0x90] sm:$0xff] %vm47, %v301
  %388 = vst.msk [vmem:[%s2 + $0x98] sm:$0xff] %vm47, %v306
  %389 = vst.msk [vmem:[%s2 + $0xa0] sm:$0xff] %vm47, %v311
  %390 = vst.msk [vmem:[%s2 + $0xa8] sm:$0xff] %vm47, %v316
  %391 = vst.msk [vmem:[%s2 + $0xb0] sm:$0xff] %vm47, %v321
  %392 = vst.msk [vmem:[%s2 + $0xb8] sm:$0xff] %vm47, %v326
  %393 = vst.msk [vmem:[%s2 + $0xc0] sm:$0xff] %vm47, %v331
  %394 = vst.msk [vmem:[%s2 + $0xc8] sm:$0xff] %vm47, %v336
  %395 = vst.msk [vmem:[%s2 + $0xd0] sm:$0xff] %vm47, %v341
  %396 = vst.msk [vmem:[%s2 + $0xd8] sm:$0xff] %vm47, %v346
  %397 = vst.msk [vmem:[%s2 + $0xe0] sm:$0xff] %vm47, %v351
  %398 = vst.msk [vmem:[%s2 + $0xe8] sm:$0xff] %vm47, %v356
  %399 = vst.msk [vmem:[%s2 + $0xf0] sm:$0xff] %vm47, %v361
  %400 = vst.msk [vmem:[%s2 + $0xf8] sm:$0xff] %vm47, %v366
  // Predicated region
  $region10: #{tpu_custom_call.1} parent=0 // pred_check
    _
  $region11: #{tpu_custom_call.1} parent=0 // pred_check_branch
    %402 = sbr.rel (0) target = $region13
  $region12: #{tpu_custom_call.1} parent=0 // pred_region
    _
  $region13: #{tpu_custom_call.1} parent=0 // pred_fallthru
    _
  // Predicated region
  $region14: #{tpu_custom_call.1} parent=0 // pred_check
    _
  $region15: #{tpu_custom_call.1} parent=0 // pred_check_branch
    %404 = sbr.rel (0) target = $region17
  $region16: #{tpu_custom_call.1} parent=0 // pred_region
    _
  $region17: #{tpu_custom_call.1} parent=0 // pred_fallthru
    _

</llo_original>
